<compile_context>
chip_gen: v6e
topology: v6e:2x2x1
jax: 0.10.0
libtpu: 0.0.40
codegen_flags: <defaults>
</compile_context>

<pallas_src>
import functools

import jax
import jax.numpy as jnp
from jax.experimental import pallas as pl
from jax.experimental.pallas import tpu as pltpu


def _round_up(x, m):
    return ((x + m - 1) // m) * m


def _padded_tile_bytes(shape, elem_bytes=4):
    """f32 VMEM footprint of one tile, with (8,128) minor-dim padding."""
    s = list(shape)
    s[-1] = _round_up(s[-1], 128)
    if len(s) >= 2:
        s[-2] = _round_up(s[-2], 8)
    n = 1
    for d in s:
        n *= int(d)
    return elem_bytes * n


def _vmem_limit(per_step_bytes):
    # double-buffered per-step tiles + headroom; capped at 48 MiB so v7x's
    # 64 MiB physical VMEM keeps >= 16 MiB for compiler-internal scratch.
    need = 2 * per_step_bytes + (8 << 20)
    return int(min(max(need, 32 << 20), 48 << 20))


# ----------------------------------------------------------------------------
# Kernel 1: fused Q/K/V projection (tiled matmul + bias, weights+bias packed)
# ----------------------------------------------------------------------------
def qkv_kernel(x_ref, wb_ref, o_ref):
    cin = x_ref.shape[1]
    w = wb_ref[0:cin, :]          # (Cin, Cout)
    b = wb_ref[cin:cin + 1, :]    # (1,  Cout)
    o_ref[...] = (
        jnp.dot(x_ref[...], w, preferred_element_type=jnp.float32) + b
    ).astype(o_ref.dtype)


def qkv_project(x, w, b, *, tile_n=1024):
    N, Cin = x.shape
    Cout = w.shape[1]
    wb = jnp.concatenate([w, b.reshape(1, Cout)], axis=0).astype(jnp.float32)

    tn = min(_round_up(tile_n, 8), _round_up(N, 8))
    Np = _round_up(N, tn)
    xp = jnp.pad(x, ((0, Np - N), (0, 0))) if Np != N else x   # small (N,Cin) copy

    per_step = (_padded_tile_bytes((tn, Cin)) + _padded_tile_bytes((Cin + 1, Cout))
                + _padded_tile_bytes((tn, Cout)))

    out = pl.pallas_call(
        qkv_kernel,
        out_shape=jax.ShapeDtypeStruct((Np, Cout), jnp.float32),
        grid_spec=pltpu.PrefetchScalarGridSpec(
            num_scalar_prefetch=0,
            grid=(Np // tn,),
            in_specs=[
                pl.BlockSpec((tn, Cin), lambda i: (i, 0)),
                pl.BlockSpec((Cin + 1, Cout), lambda i: (0, 0)),
            ],
            out_specs=pl.BlockSpec((tn, Cout), lambda i: (i, 0)),
        ),
        compiler_params=pltpu.CompilerParams(
            dimension_semantics=("parallel",),
            vmem_limit_bytes=_vmem_limit(per_step),
        ),
    )(xp, wb)
    return out[:N]


# ----------------------------------------------------------------------------
# Weight packing for the attention kernel: one sublane-aligned, lane-padded
# slab holding the block-diagonal weights, folded-BN vectors and the 0/1
# helper matrices (xq tiling / softmax-sum / share-plane expansion / reduce).
# ----------------------------------------------------------------------------
def _pack_attn_weights(params, *, ns, mid, C, cs, share):
    f32 = jnp.float32
    eye = lambda n: jnp.eye(n, dtype=f32)

    def bdiag(w):                      # NS copies of w on the block diagonal
        return jnp.kron(eye(ns), jnp.asarray(w, f32))

    def tilev(v, width):               # per-channel vector tiled over neighbors
        return jnp.tile(jnp.asarray(v, f32).reshape(-1), ns).reshape(1, ns * width)

    entries = [
        ("wp1_bd", bdiag(params["wp1"])),                            # (ns*3, ns*3)
        ("bp1",    tilev(params["bp1"], 3)),
        ("bnp_s",  tilev(params["bnp_s"], 3)),
        ("bnp_b",  tilev(params["bnp_b"], 3)),
        ("wp2_bd", bdiag(params["wp2"])),                            # (ns*3, ns*C)
        ("bp2",    tilev(params["bp2"], C)),
        ("t_xq",   jnp.tile(eye(mid), (1, ns))),                     # (mid, ns*mid)
        ("bnw1_s", tilev(params["bnw1_s"], mid)),
        ("bnw1_b", tilev(params["bnw1_b"], mid)),
        ("ww1_bd", bdiag(params["ww1"])),                            # (ns*mid, ns*cs)
        ("bw1",    tilev(params["bw1"], cs)),
        ("bnw2_s", tilev(params["bnw2_s"], cs)),
        ("bnw2_b", tilev(params["bnw2_b"], cs)),
        ("ww2_bd", bdiag(params["ww2"])),                            # (ns*cs, ns*cs)
        ("bw2",    tilev(params["bw2"], cs)),
        ("s_sum",  jnp.tile(eye(cs), (ns, ns))),                     # (ns*cs, ns*cs)
        ("e_exp",  jnp.kron(eye(ns), jnp.tile(eye(cs), (1, share)))),# (ns*cs, ns*C)
        ("r_red",  jnp.tile(eye(C), (ns, 1))),                       # (ns*C, C)
    ]
    maxw = max(int(a.shape[1]) for _, a in entries)
    rows, offs, shapes = [], {}, {}
    r = 0
    for name, a in entries:
        nr, w = int(a.shape[0]), int(a.shape[1])
        offs[name] = r
        shapes[name] = (nr, w)
        nr_pad = _round_up(nr, 8)          # sublane-aligned section starts
        rows.append(jnp.pad(a, ((0, nr_pad - nr), (0, maxw - w))))
        r += nr_pad
    slab = jnp.concatenate(rows, axis=0)
    return slab, offs, shapes


# ----------------------------------------------------------------------------
# Kernel 2: fused point-transformer attention on lane-packed 2-D slabs
#   xq:(tn, mid)  xk:(tn, ns*mid)  xv:(tn, ns*C)  pr:(tn, ns*3)  ->  (tn, C)
# ----------------------------------------------------------------------------
def attn_kernel(xq_ref, xk_ref, xv_ref, pr_ref, wt_ref, out_ref,
                *, offs, shapes):
    def sec(name):
        r = offs[name]
        nr, w = shapes[name]
        return wt_ref[r:r + nr, 0:w]

    dot = lambda a, b: jnp.dot(a, b, preferred_element_type=jnp.float32)

    pr = pr_ref[...]        # (tn, ns*3)
    xq = xq_ref[...]        # (tn, mid)
    xk = xk_ref[...]        # (tn, ns*mid)
    xv = xv_ref[...]        # (tn, ns*C)

    # linear_p: Linear(3,3) -> BN(3) (folded) -> ReLU -> Linear(3, C),
    # applied per neighbor via block-diagonal matmuls on the packed layout.
    h = jnp.maximum((dot(pr, sec("wp1_bd")) + sec("bp1")) * sec("bnp_s")
                    + sec("bnp_b"), 0.0)                 # (tn, ns*3)
    p_emb = dot(h, sec("wp2_bd")) + sec("bp2")           # (tn, ns*C)

    # w = x_k - x_q (broadcast over neighbors) + p_r   (mid_planes == out_planes)
    w = xk + p_emb - dot(xq, sec("t_xq"))                # (tn, ns*mid)

    # linear_w: BN(mid) -> ReLU -> Linear(mid,cs) -> BN(cs) -> ReLU -> Linear(cs,cs)
    w = jnp.maximum(w * sec("bnw1_s") + sec("bnw1_b"), 0.0)
    w = dot(w, sec("ww1_bd")) + sec("bw1")               # (tn, ns*cs); K = ns*mid
    w = jnp.maximum(w * sec("bnw2_s") + sec("bnw2_b"), 0.0)
    w = dot(w, sec("ww2_bd")) + sec("bw2")               # (tn, ns*cs)

    # softmax over the neighbor axis.  A per-point max (constant across the
    # neighbor group) keeps softmax invariant and avoids strided lane reduces;
    # the group sum is a 0/1 matmul that broadcasts the denominator back to
    # every neighbor lane.  Reciprocal on the EUP slot + one Newton step.
    m = jnp.max(w, axis=-1, keepdims=True)
    e = jnp.exp(w - m)
    denom = dot(e, sec("s_sum"))                         # (tn, ns*cs)
    inv = pl.reciprocal(denom, approx=True)
    inv = inv * (2.0 - denom * inv)
    attn = e * inv                                       # (tn, ns*cs)

    # ((x_v + p_r).view(n,ns,s,c//s) * w[:,:,None,:]).sum(1).view(n,c)
    attn_full = dot(attn, sec("e_exp"))                  # share-plane expand -> (tn, ns*C)
    weighted = (xv + p_emb) * attn_full
    out_ref[...] = dot(weighted, sec("r_red")).astype(out_ref.dtype)


def point_transformer_attention(xq, xk_p, xv_p, pr_p, params, *, nsample,
                                share_planes, tn):
    Np, mid = xq.shape
    C = xv_p.shape[1] // nsample
    cs = mid // share_planes
    assert Np % tn == 0 and mid % share_planes == 0

    slab, offs, shapes = _pack_attn_weights(
        params, ns=nsample, mid=mid, C=C, cs=cs, share=share_planes)
    R, Wmax = slab.shape

    per_step = (_padded_tile_bytes((tn, mid))
                + _padded_tile_bytes((tn, nsample * mid))
                + _padded_tile_bytes((tn, nsample * C))
                + _padded_tile_bytes((tn, nsample * 3))
                + _padded_tile_bytes((tn, C))
                + _padded_tile_bytes((R, Wmax)))

    kernel = functools.partial(attn_kernel, offs=offs, shapes=shapes)

    return pl.pallas_call(
        kernel,
        out_shape=jax.ShapeDtypeStruct((Np, C), jnp.float32),
        grid_spec=pltpu.PrefetchScalarGridSpec(
            num_scalar_prefetch=0,
            grid=(Np // tn,),
            in_specs=[
                pl.BlockSpec((tn, mid), lambda i: (i, 0)),
                pl.BlockSpec((tn, nsample * mid), lambda i: (i, 0)),
                pl.BlockSpec((tn, nsample * C), lambda i: (i, 0)),
                pl.BlockSpec((tn, nsample * 3), lambda i: (i, 0)),
                pl.BlockSpec((R, Wmax), lambda i: (0, 0)),   # constant -> DMA'd once
            ],
            out_specs=pl.BlockSpec((tn, C), lambda i: (i, 0)),
        ),
        compiler_params=pltpu.CompilerParams(
            dimension_semantics=("parallel",),   # shards across the 2 TCs on v7x
            vmem_limit_bytes=_vmem_limit(per_step),
        ),
    )(xq, xk_p, xv_p, pr_p, slab)


# ----------------------------------------------------------------------------
# Glue: KNN (pointops.queryandgroup equivalent) + full forward
# ----------------------------------------------------------------------------
def knn_indices(p, o, nsample):
    N = p.shape[0]
    batch_id = jnp.sum(jnp.arange(N)[:, None] >= o[None, :], axis=1)
    d2 = jnp.sum((p[:, None, :] - p[None, :, :]) ** 2, axis=-1)
    d2 = jnp.where(batch_id[:, None] == batch_id[None, :], d2, jnp.float32(1e30))
    _, idx = jax.lax.top_k(-d2, nsample)   # includes self (distance 0)
    return idx


def point_transformer_layer(p, x, o, params, *, nsample, share_planes,
                            tile_n_qkv=1024, tile_n_attn=512):
    N = x.shape[0]
    mid = params["wq"].shape[1]
    C = params["wv"].shape[1]
    assert mid == C, "mid_planes == out_planes in PointTransformerLayer"

    # 1) fused QKV projection (Pallas kernel 1)
    w_all = jnp.concatenate([params["wq"], params["wk"], params["wv"]], axis=1)
    b_all = jnp.concatenate([params["bq"], params["bk"], params["bv"]])
    qkv = qkv_project(x, w_all, b_all, tile_n=tile_n_qkv)
    x_q, x_k, x_v = qkv[:, :mid], qkv[:, mid:2 * mid], qkv[:, 2 * mid:]

    # 2) queryandgroup: KNN (plain JAX glue)
    idx = knn_indices(p, o, nsample)                       # (N, nsample) int32

    # 3) pad only the SMALL per-point arrays to the tile multiple, then gather
    #    so the nsample-inflated slabs come out already tile-aligned.
    tn = min(_round_up(tile_n_attn, 8), _round_up(N, 8))
    Np = _round_up(N, tn)
    pad = Np - N
    idx_p = jnp.pad(idx, ((0, pad), (0, 0)))               # padded rows gather point 0
    p_pad = jnp.pad(p, ((0, pad), (0, 0)))
    xq_pad = jnp.pad(x_q, ((0, pad), (0, 0)))

    # lane-packed grouped slabs: (Np, nsample*3 / nsample*mid / nsample*C)
    pr_p = (p[idx_p] - p_pad[:, None, :]).reshape(Np, nsample * 3)
    xk_p = x_k[idx_p].reshape(Np, nsample * mid)
    xv_p = x_v[idx_p].reshape(Np, nsample * C)

    # 4) fused attention (Pallas kernel 2)
    out = point_transformer_attention(
        xq_pad, xk_p, xv_p, pr_p, params,
        nsample=nsample, share_planes=share_planes, tn=tn)
    return out[:N]


# ----------------------------------------------------------------------------
# Pure-JAX reference (same math) for a correctness check
# ----------------------------------------------------------------------------
def reference_forward(p, x, o, params, *, nsample, share_planes):
    x_q = x @ params["wq"] + params["bq"]
    x_k = x @ params["wk"] + params["bk"]
    x_v = x @ params["wv"] + params["bv"]
    idx = knn_indices(p, o, nsample)
    pr = p[idx] - p[:, None, :]
    xk_g, xv_g = x_k[idx], x_v[idx]

    h = jnp.maximum((pr @ params["wp1"] + params["bp1"]) * params["bnp_s"]
                    + params["bnp_b"], 0.0)
    p_emb = h @ params["wp2"] + params["bp2"]

    w = xk_g - x_q[:, None, :] + p_emb
    w = jnp.maximum(w * params["bnw1_s"] + params["bnw1_b"], 0.0)
    w = w @ params["ww1"] + params["bw1"]
    w = jnp.maximum(w * params["bnw2_s"] + params["bnw2_b"], 0.0)
    w = w @ params["ww2"] + params["bw2"]
    w = jax.nn.softmax(w, axis=1)

    v = xv_g + p_emb
    n, ns, c = v.shape
    return jnp.sum(
        v.reshape(n, ns, share_planes, c // share_planes) * w[:, :, None, :], axis=1
    ).reshape(n, c)


# ----------------------------------------------------------------------------
if __name__ == "__main__":
    # Small, non-tile-aligned point count to exercise the ragged / padded path.
    N, IN_PLANES, OUT_PLANES, SHARE, NSAMPLE = 200, 16, 16, 8, 8
    MID = OUT_PLANES          # mid_planes = out_planes // 1
    CS = MID // SHARE

    key = jax.random.PRNGKey(0)
    keys = iter(jax.random.split(key, 64))

    def nrm(shape, scale=0.1):
        return scale * jax.random.normal(next(keys), shape, dtype=jnp.float32)

    # inputs: p (N,3) coords, x (N,Cin) features, o (B,) cumulative offsets
    p = jax.random.uniform(next(keys), (N, 3), dtype=jnp.float32)
    x = 0.5 * jax.random.normal(next(keys), (N, IN_PLANES), dtype=jnp.float32)
    o = jnp.array([120, 200], dtype=jnp.int32)

    def folded_bn(cdim):
        gamma = 1.0 + nrm((cdim,))
        beta = nrm((cdim,))
        mean = nrm((cdim,))
        var = 1.0 + 0.1 * jnp.abs(jax.random.normal(next(keys), (cdim,), dtype=jnp.float32))
        scale = gamma / jnp.sqrt(var + 1e-5)
        bias = beta - mean * scale
        return scale.reshape(1, cdim), bias.reshape(1, cdim)

    params = {
        # q/k/v projections (weights stored as (in, out) == torch weight.T)
        "wq": nrm((IN_PLANES, MID)), "bq": nrm((MID,)),
        "wk": nrm((IN_PLANES, MID)), "bk": nrm((MID,)),
        "wv": nrm((IN_PLANES, OUT_PLANES)), "bv": nrm((OUT_PLANES,)),
        # linear_p
        "wp1": nrm((3, 3)), "bp1": nrm((1, 3)),
        "wp2": nrm((3, OUT_PLANES)), "bp2": nrm((1, OUT_PLANES)),
        # linear_w
        "ww1": nrm((MID, CS)), "bw1": nrm((1, CS)),
        "ww2": nrm((CS, CS)), "bw2": nrm((1, CS)),
    }
    params["bnp_s"], params["bnp_b"] = folded_bn(3)
    params["bnw1_s"], params["bnw1_b"] = folded_bn(MID)
    params["bnw2_s"], params["bnw2_b"] = folded_bn(CS)

    out = point_transformer_layer(
        p, x, o, params, nsample=NSAMPLE, share_planes=SHARE,
        tile_n_qkv=64, tile_n_attn=64,   # small tiles here to exercise the grid
    )
    out = jax.block_until_ready(out)

    ref = reference_forward(p, x, o, params, nsample=NSAMPLE, share_planes=SHARE)

    assert out.shape == (N, OUT_PLANES), out.shape
    assert bool(jnp.all(jnp.isfinite(out)))
    assert jnp.allclose(out, ref, rtol=2e-3, atol=2e-3), (
        float(jnp.max(jnp.abs(out - ref)))
    )
    print("KERNEL_OK")
</pallas_src>

<mosaic_0001>
module attributes {stable_mosaic.version = 11 : i64} {
  func.func @qkv_kernel(%arg0: i32, %arg1: memref<64x16xf32, #tpu.memory_space<vmem>>, %arg2: memref<17x48xf32, #tpu.memory_space<vmem>>, %arg3: memref<64x48xf32, #tpu.memory_space<vmem>>) attributes {dimension_semantics = [#tpu.dimension_semantics<parallel>], iteration_bounds = array<i64: 4>, scalar_prefetch = 0 : i64, scratch_operands = 0 : i64, tpu.core_type = #tpu.core_type<tc>, window_params = [{transform_indices = @transform_0, window_bounds = array<i64: 64, 16>}, {pipeline_mode = #tpu.pipeline_mode<synchronous>, transform_indices = @transform_1, window_bounds = array<i64: 17, 48>}, {transform_indices = @transform_2, window_bounds = array<i64: 64, 48>}]} {
    %c0 = arith.constant 0 : index
    %c0_0 = arith.constant 0 : index
    %0 = vector.load %arg2[%c0, %c0_0] : memref<17x48xf32, #tpu.memory_space<vmem>>, vector<16x48xf32>
    %c16 = arith.constant 16 : index
    %c0_1 = arith.constant 0 : index
    %1 = vector.load %arg2[%c16, %c0_1] : memref<17x48xf32, #tpu.memory_space<vmem>>, vector<1x48xf32>
    %c0_2 = arith.constant 0 : index
    %c0_3 = arith.constant 0 : index
    %2 = vector.load %arg1[%c0_2, %c0_3] : memref<64x16xf32, #tpu.memory_space<vmem>>, vector<64x16xf32>
    %cst = arith.constant dense<0.000000e+00> : vector<64x48xf32>
    %3 = tpu.matmul %2, %0, %cst {dimension_numbers = #tpu.dot_dimension_numbers<[1], [0], [0], [1], [0, 0, 1, 1], [], []>} : vector<64x16xf32>, vector<16x48xf32>, vector<64x48xf32> -> vector<64x48xf32>
    %4 = vector.broadcast %1 : vector<1x48xf32> to vector<64x48xf32>
    %5 = arith.addf %3, %4 : vector<64x48xf32>
    %c0_4 = arith.constant 0 : index
    %c0_5 = arith.constant 0 : index
    %6 = vector.load %arg3[%c0_4, %c0_5] : memref<64x48xf32, #tpu.memory_space<vmem>>, vector<64x48xf32>
    tpu.vector_store %arg3[%c0_4, %c0_5], %5 {strides = array<i32>} : memref<64x48xf32, #tpu.memory_space<vmem>>, vector<64x48xf32>,
    return
  }
  func.func @transform_0(%arg0: i32) -> (i32, i32) {
    %c0_i32 = arith.constant 0 : i32
    %c0_i32_0 = arith.constant 0 : i32
    return %arg0, %c0_i32 : i32, i32
  }
  func.func @transform_1(%arg0: i32) -> (i32, i32) {
    %c0_i32 = arith.constant 0 : i32
    %c0_i32_0 = arith.constant 0 : i32
    %c0_i32_1 = arith.constant 0 : i32
    return %c0_i32, %c0_i32_0 : i32, i32
  }
  func.func @transform_2(%arg0: i32) -> (i32, i32) {
    %c0_i32 = arith.constant 0 : i32
    %c0_i32_0 = arith.constant 0 : i32
    return %arg0, %c0_i32 : i32, i32
  }
}

</mosaic_0001>

<llo_original>
// kernel: tpu_custom_call.1
$region0: #{tpu_custom_call.1}
  #allocation0 [shape = 'u32[]', space=smem, size = 0x4, offset = 0x4, fixed_abs, tag = 'smem constant byte address 0x4 - core index']
  #allocation1 [shape = 'u32[144,128]{1,0:T(1,128)}', space=vmem, size = 0x12000, scoped, tag = 'internal scratch']
  %s0 = inlined_call_operand.vmem [shape: f32[256,16], index: 0, kind: input, shape index: {}]
  %s1 = inlined_call_operand.vmem [shape: f32[17,48], index: 1, kind: input, shape index: {}]
  %s2 = inlined_call_operand.vmem [shape: f32[256,48], index: 2, kind: output, shape index: {}]
  %s3 = sld [smem:[#allocation0]]
  $region41: #{tpu_custom_call.1} parent=0
    _
  %s5 = ssub.s32 1, %s3
  %s6 = scalar_select 0, %s5, %s3
  loop: start=0, step=1, limit=6
  $region2: #{tpu_custom_call.1} parent=0 // loop_pre_header
    _
  $region3: #{tpu_custom_call.1} parent=0 // loop_header
    %s8 = sphi 0, %s12
    %p9 = scmp.ge.s32.totalorder %s8, 6
    %s18 = sphi 0, %s20
    %s21 = sphi 0, %s18
    %s22 = sphi 0, %s21
    %s38 = sphi 0, %s22
    %s42 = sphi 0, %s42
    %s44 = sphi 0, %s42
    %s45 = sphi 0, %s44
    %s59 = sphi 0, %s45
    %s65 = sphi 0, %s67
    %s68 = sphi 0, %s65
    %s69 = sphi 0, %s68
    %s85 = sphi 0, %s69
  $region4: #{tpu_custom_call.1} parent=0 // loop_header_branch
    %11 = sbr.rel (%p9) target = $region8
  $region5: #{tpu_custom_call.1} parent=0 // loop_body
    %s13 = ssub.s32 %s8, 1
    %s14 = ssub.s32 %s8, 2
    %s15 = sadd.s32 %s8, 1
    %s16 = ssub.s32 %s8, %s15
    %p17 = scmp.eq.s32.totalorder %s16, 0
    %s19 = sadd.s32 %s18, 1
    %s20 = scalar_select %p17, %s18, %s19
    %p23 = pneg %p17
    %p24 = scmp.eq.s32.totalorder %s8, 3
    %p25 = por %p23, %p24
    %p26 = scmp.ne.s32.totalorder %s18, %s21
    %p27 = scmp.eq.s32.totalorder %s8, 0
    %p28 = por %p26, %p27
    %p29 = scmp.ne.s32.totalorder %s18, %s21
    %p30 = scmp.eq.s32.totalorder %s13, 3
    %p31 = por %p29, %p30
    %p32 = scmp.ne.s32.totalorder %s21, %s22
    %p33 = scmp.eq.s32.totalorder %s13, 0
    %p34 = por %p32, %p33
    %p35 = scmp.ne.s32.totalorder %s21, %s22
    %p36 = scmp.eq.s32.totalorder %s14, 3
    %p37 = por %p35, %p36
    %p39 = scmp.ne.s32.totalorder %s22, %s38
    %p40 = scmp.eq.s32.totalorder %s14, 0
    %p41 = por %p39, %p40
    %s43 = sadd.s32 %s42, 1
    %p46 = scmp.eq.s32.totalorder %s8, 3
    %p47 = scmp.ne.s32.totalorder %s42, %s44
    %p48 = scmp.eq.s32.totalorder %s8, 0
    %p49 = por %p47, %p48
    %p50 = scmp.ne.s32.totalorder %s42, %s44
    %p51 = scmp.eq.s32.totalorder %s13, 3
    %p52 = por %p50, %p51
    %p53 = scmp.ne.s32.totalorder %s44, %s45
    %p54 = scmp.eq.s32.totalorder %s13, 0
    %p55 = por %p53, %p54
    %p56 = scmp.ne.s32.totalorder %s44, %s45
    %p57 = scmp.eq.s32.totalorder %s14, 3
    %p58 = por %p56, %p57
    %p60 = scmp.ne.s32.totalorder %s45, %s59
    %p61 = scmp.eq.s32.totalorder %s14, 0
    %p62 = por %p60, %p61
    %s63 = ssub.s32 %s8, %s15
    %p64 = scmp.eq.s32.totalorder %s63, 0
    %s66 = sadd.s32 %s65, 1
    %s67 = scalar_select %p64, %s65, %s66
    %p70 = pneg %p64
    %p71 = scmp.eq.s32.totalorder %s8, 3
    %p72 = por %p70, %p71
    %p73 = scmp.ne.s32.totalorder %s65, %s68
    %p74 = scmp.eq.s32.totalorder %s8, 0
    %p75 = por %p73, %p74
    %p76 = scmp.ne.s32.totalorder %s65, %s68
    %p77 = scmp.eq.s32.totalorder %s13, 3
    %p78 = por %p76, %p77
    %p79 = scmp.ne.s32.totalorder %s68, %s69
    %p80 = scmp.eq.s32.totalorder %s13, 0
    %p81 = por %p79, %p80
    %p82 = scmp.ne.s32.totalorder %s68, %s69
    %p83 = scmp.eq.s32.totalorder %s14, 3
    %p84 = por %p82, %p83
    %p86 = scmp.ne.s32.totalorder %s69, %s85
    %p87 = scmp.eq.s32.totalorder %s14, 0
    %p88 = por %p86, %p87
    %p89 = scmp.le.s32.totalorder 1, %s8
    %p90 = scmp.lt.s32.totalorder %s8, 5
    %p91 = pnand %p89, %p90
    %p92 = pneg %p91
    // Predicated region
    $region9: #{tpu_custom_call.1} parent=5 // pred_check
      _
    $region10: #{tpu_custom_call.1} parent=5 // pred_check_branch
      %94 = sbr.rel (%p91) target = $region12
    $region11: #{tpu_custom_call.1} parent=5 // pred_region
      %s95 = ssub.s32 %s8, 1
      // Predicated region
      $region13: #{tpu_custom_call.1} parent=11 // pred_check
        %p96 = pneg %p55
      $region14: #{tpu_custom_call.1} parent=11 // pred_check_branch
        %98 = sbr.rel (%p96) target = $region16
      $region15: #{tpu_custom_call.1} parent=11 // pred_region
        _
      $region16: #{tpu_custom_call.1} parent=11 // pred_fallthru
        _
    $region12: #{tpu_custom_call.1} parent=5 // pred_fallthru
      _
    %p99 = scmp.lt.s32.totalorder %s8, 4
    // Predicated region
    $region17: #{tpu_custom_call.1} parent=5 // pred_check
      %p100 = pneg %p99
    $region18: #{tpu_custom_call.1} parent=5 // pred_check_branch
      %102 = sbr.rel (%p100) target = $region20
    $region19: #{tpu_custom_call.1} parent=5 // pred_region
      // Predicated region
      $region21: #{tpu_custom_call.1} parent=19 // pred_check
        %p103 = pneg %p28
      $region22: #{tpu_custom_call.1} parent=19 // pred_check_branch
        %105 = sbr.rel (%p103) target = $region24
      $region23: #{tpu_custom_call.1} parent=19 // pred_region
        %s106 = smul.u32 8, %s8
        %p107 = scmp.lt.s32.totalorder %s106, 31
        %s108 = scalar_select %p107, %s106, 31
        %s109 = smul.addr %s108, 8
        %s110 = scalar_lea.vmem %s0, %s109
        %s111 = smul.u32 8, %s8
      $region24: #{tpu_custom_call.1} parent=19 // pred_fallthru
        _
    $region20: #{tpu_custom_call.1} parent=5 // pred_fallthru
      _
    %p112 = scmp.le.s32.totalorder 1, %s8
    %p113 = scmp.lt.s32.totalorder %s8, 5
    %p114 = pnand %p112, %p113
    %p115 = pneg %p114
    // Predicated region
    $region25: #{tpu_custom_call.1} parent=5 // pred_check
      _
    $region26: #{tpu_custom_call.1} parent=5 // pred_check_branch
      %117 = sbr.rel (%p114) target = $region28
    $region27: #{tpu_custom_call.1} parent=5 // pred_region
      %s118 = ssub.s32 %s8, 1
      %s119 = smul.u32 8, %s13
      %p120 = scmp.lt.s32.totalorder %s119, 31
      %s121 = scalar_select %p120, %s119, 31
      %s122 = smul.addr %s121, 8
      %s123 = scalar_lea.vmem %s0, %s122
      %p124 = pneg %p34
      %p125 = pneg %p31
      %p126 = pneg %p55
      %p127 = pneg %p52
      %p128 = pneg %p81
      %p129 = pneg %p78
      %s130 = smul.u32 8, %s13
      %p131 = scmp.lt.s32.totalorder %s130, 31
      %s132 = scalar_select %p131, %s130, 31
      %s133 = smul.addr %s132, 8
      %s134 = scalar_lea.vmem %s2, %s133
      %s135 = smul.u32 8, %s13
      %p136 = scmp.lt.s32.totalorder %s135, 31
      %s137 = scalar_select %p136, %s135, 31
      %s138 = smul.addr %s137, 8
      %s139 = scalar_lea.vmem %s0, %s138
      %s140 = smul.u32 8, %s13
      %s141 = smul.u32 8, %s13
      %p142 = scmp.lt.s32.totalorder %s141, 31
      %s143 = scalar_select %p142, %s141, 31
      %s144 = smul.addr %s143, 8
      %s145 = scalar_lea.vmem %s2, %s144
      %s146 = smul.u32 8, %s13
      %v147 = vld [vmem:[%s1] sm:$0xff]
      %v148 = vld [vmem:[%s1 + $0x8] sm:$0xff]
      %v149 = vld [vmem:[%s1 + $0x10] sm:$0x1]
      %v150 = vld [vmem:[%s139] sm:$0xff]
      %v151 = vld [vmem:[%s139 + $0x8] sm:$0xff]
      %v152 = vld [vmem:[%s139 + $0x10] sm:$0xff]
      %v153 = vld [vmem:[%s139 + $0x18] sm:$0xff]
      %v154 = vld [vmem:[%s139 + $0x20] sm:$0xff]
      %v155 = vld [vmem:[%s139 + $0x28] sm:$0xff]
      %v156 = vld [vmem:[%s139 + $0x30] sm:$0xff]
      %v157 = vld [vmem:[%s139 + $0x38] sm:$0xff]
      %v158 = vlaneseq
      %v159 = vshrl.u32 %v158, 7
      %v160 = vsub.s32 0, %v159
      %v161 = vrot.slane %v149, %v160
      %vm162 = vcmask 130048
      %v164 = vsel %vm162, %v150, 0
      %v167 = vsel %vm162, %v151, 0
      %v170 = vsel %vm162, %v152, 0
      %v173 = vsel %vm162, %v153, 0
      %v176 = vsel %vm162, %v154, 0
      %v179 = vsel %vm162, %v155, 0
      %v182 = vsel %vm162, %v156, 0
      %v185 = vsel %vm162, %v157, 0
      %187 = vmatprep.subr.mxu0 0.0
      %188 = vmatpush1.msra.mxu0 0.0
      %189 = vmatprep.subr.mxu0 0.0
      %190 = vmatpush1.msra.mxu0 0.0
      %191 = vmatprep.subr.mxu0 0.0
      %192 = vmatpush1.msra.mxu0 0.0
      %193 = vmatprep.subr.mxu0 0.0
      %194 = vmatpush1.msra.mxu0 0.0
      %195 = vmatprep.subr.mxu0 0.0
      %196 = vmatpush1.msra.mxu0 0.0
      %197 = vmatprep.subr.mxu0 0.0
      %198 = vmatpush1.msra.mxu0 0.0
      %199 = vmatprep.subr.mxu0 0.0
      %200 = vmatpush1.msra.mxu0 0.0
      %201 = vmatprep.subr.mxu0 0.0
      %202 = vmatpush1.msra.mxu0 0.0
      %203 = vmatprep.subr.mxu0 0.0
      %204 = vmatpush1.msra.mxu0 0.0
      %205 = vmatprep.subr.mxu0 0.0
      %206 = vmatpush1.msra.mxu0 0.0
      %207 = vmatprep.subr.mxu0 0.0
      %208 = vmatpush1.msra.mxu0 0.0
      %209 = vmatprep.subr.mxu0 0.0
      %210 = vmatpush1.msra.mxu0 0.0
      %211 = vmatprep.subr.mxu0 0.0
      %212 = vmatpush1.msra.mxu0 0.0
      %213 = vmatprep.subr.mxu0 0.0
      %214 = vmatpush1.msra.mxu0 0.0
      %215 = vmatprep.subr.mxu0 0.0
      %216 = vmatpush1.msra.mxu0 %v148
      %217 = vmatprep.subr.mxu0 0.0
      %218 = vmatpush1.msra.mxu0 %v147
      %219 = vmatprep.subr.mxu0 0.0
      %220 = vmatpush2.msra.mxu0 0.0
      %221 = vmatprep.subr.mxu0 0.0
      %222 = vmatpush2.msra.mxu0 0.0
      %223 = vmatprep.subr.mxu0 0.0
      %224 = vmatpush2.msra.mxu0 0.0
      %225 = vmatprep.subr.mxu0 0.0
      %226 = vmatpush2.msra.mxu0 0.0
      %227 = vmatprep.subr.mxu0 0.0
      %228 = vmatpush2.msra.mxu0 0.0
      %229 = vmatprep.subr.mxu0 0.0
      %230 = vmatpush2.msra.mxu0 0.0
      %231 = vmatprep.subr.mxu0 0.0
      %232 = vmatpush2.msra.mxu0 0.0
      %233 = vmatprep.subr.mxu0 0.0
      %234 = vmatpush2.msra.mxu0 0.0
      %235 = vmatprep.subr.mxu0 0.0
      %236 = vmatpush2.msra.mxu0 0.0
      %237 = vmatprep.subr.mxu0 0.0
      %238 = vmatpush2.msra.mxu0 0.0
      %239 = vmatprep.subr.mxu0 0.0
      %240 = vmatpush2.msra.mxu0 0.0
      %241 = vmatprep.subr.mxu0 0.0
      %242 = vmatpush2.msra.mxu0 0.0
      %243 = vmatprep.subr.mxu0 0.0
      %244 = vmatpush2.msra.mxu0 0.0
      %245 = vmatprep.subr.mxu0 0.0
      %246 = vmatpush2.msra.mxu0 0.0
      %247 = vmatprep.subr.mxu0 0.0
      %248 = vmatpush2.msra.mxu0 0.0
      %249 = vmatprep.subr.mxu0 0.0
      %250 = vmatpush2.msra.mxu0 0.0
      %251 = vmatprep.mubr.f32.mxu0 0.0
      %252 = vmatmul.mubr.f32.gmra.mxu0 %v164
      %v253 = vpop.f32.mrf.mxu0
      %v254 = vadd.f32 %v161, %v253
      %v255 = vpop.f32.mrf.mxu0
      %256 = vmatprep.mubr.f32.mxu0 0.0
      %257 = vmatmul.mubr.f32.gmra.mxu0 %v167
      %v258 = vpop.f32.mrf.mxu0
      %v259 = vadd.f32 %v161, %v258
      %v260 = vpop.f32.mrf.mxu0
      %261 = vmatprep.mubr.f32.mxu0 0.0
      %262 = vmatmul.mubr.f32.gmra.mxu0 %v170
      %v263 = vpop.f32.mrf.mxu0
      %v264 = vadd.f32 %v161, %v263
      %v265 = vpop.f32.mrf.mxu0
      %266 = vmatprep.mubr.f32.mxu0 0.0
      %267 = vmatmul.mubr.f32.gmra.mxu0 %v173
      %v268 = vpop.f32.mrf.mxu0
      %v269 = vadd.f32 %v161, %v268
      %v270 = vpop.f32.mrf.mxu0
      %271 = vmatprep.mubr.f32.mxu0 0.0
      %272 = vmatmul.mubr.f32.gmra.mxu0 %v176
      %v273 = vpop.f32.mrf.mxu0
      %v274 = vadd.f32 %v161, %v273
      %v275 = vpop.f32.mrf.mxu0
      %276 = vmatprep.mubr.f32.mxu0 0.0
      %277 = vmatmul.mubr.f32.gmra.mxu0 %v179
      %v278 = vpop.f32.mrf.mxu0
      %v279 = vadd.f32 %v161, %v278
      %v280 = vpop.f32.mrf.mxu0
      %281 = vmatprep.mubr.f32.mxu0 0.0
      %282 = vmatmul.mubr.f32.gmra.mxu0 %v182
      %v283 = vpop.f32.mrf.mxu0
      %v284 = vadd.f32 %v161, %v283
      %v285 = vpop.f32.mrf.mxu0
      %286 = vmatprep.mubr.f32.mxu0 0.0
      %287 = vmatmul.mubr.f32.gmra.mxu0 %v185
      %v288 = vpop.f32.mrf.mxu0
      %v289 = vadd.f32 %v161, %v288
      %v290 = vpop.f32.mrf.mxu0
      %291 = vdwg.mxu0
      %vm292 = vcmask 392192
      %293 = vst.msk [vmem:[%s145] sm:$0xff] %vm292, %v254
      %294 = vst.msk [vmem:[%s145 + $0x8] sm:$0xff] %vm292, %v259
      %295 = vst.msk [vmem:[%s145 + $0x10] sm:$0xff] %vm292, %v264
      %296 = vst.msk [vmem:[%s145 + $0x18] sm:$0xff] %vm292, %v269
      %297 = vst.msk [vmem:[%s145 + $0x20] sm:$0xff] %vm292, %v274
      %298 = vst.msk [vmem:[%s145 + $0x28] sm:$0xff] %vm292, %v279
      %299 = vst.msk [vmem:[%s145 + $0x30] sm:$0xff] %vm292, %v284
      %300 = vst.msk [vmem:[%s145 + $0x38] sm:$0xff] %vm292, %v289
      %s301 = smul.u32 8, %s13
      %p302 = scmp.lt.s32.totalorder %s301, 31
      %s303 = scalar_select %p302, %s301, 31
      %s304 = smul.addr %s303, 8
      %s305 = scalar_lea.vmem %s2, %s304
      // Predicated region
      $region29: #{tpu_custom_call.1} parent=27 // pred_check
        %p306 = pneg %p78
      $region30: #{tpu_custom_call.1} parent=27 // pred_check_branch
        %308 = sbr.rel (%p306) target = $region32
      $region31: #{tpu_custom_call.1} parent=27 // pred_region
        %s309 = smul.u32 8, %s13
      $region32: #{tpu_custom_call.1} parent=27 // pred_fallthru
        _
    $region28: #{tpu_custom_call.1} parent=5 // pred_fallthru
      _
    %p310 = scmp.le.s32.totalorder 2, %s8
    // Predicated region
    $region33: #{tpu_custom_call.1} parent=5 // pred_check
      %p311 = pneg %p310
    $region34: #{tpu_custom_call.1} parent=5 // pred_check_branch
      %313 = sbr.rel (%p311) target = $region36
    $region35: #{tpu_custom_call.1} parent=5 // pred_region
      %s314 = ssub.s32 %s8, 2
      // Predicated region
      $region37: #{tpu_custom_call.1} parent=35 // pred_check
        %p315 = pneg %p84
      $region38: #{tpu_custom_call.1} parent=35 // pred_check_branch
        %317 = sbr.rel (%p315) target = $region40
      $region39: #{tpu_custom_call.1} parent=35 // pred_region
        %s318 = smul.u32 8, %s14
        %p319 = scmp.lt.s32.totalorder %s318, 31
        %s320 = scalar_select %p319, %s318, 31
        %s321 = smul.addr %s320, 8
        %s322 = scalar_lea.vmem %s2, %s321
      $region40: #{tpu_custom_call.1} parent=35 // pred_fallthru
        _
    $region36: #{tpu_custom_call.1} parent=5 // pred_fallthru
      _
  $region6: #{tpu_custom_call.1} parent=0 // loop_footer
    %s12 = sadd.s32 1, %s8
  $region7: #{tpu_custom_call.1} parent=0 // loop_footer_branch
    %7 = sbr.rel target = $region3
  $region8: #{tpu_custom_call.1} parent=0 // loop_exit
    _

</llo_original>
